<compile_context>
chip_gen: v7x
topology: tpu7x:2x2x1
jax: 0.10.0
libtpu: 0.0.40
codegen_flags: <defaults>
</compile_context>

<pallas_src>
import functools
import math

import jax
import jax.numpy as jnp
from jax import lax
from jax.experimental import pallas as pl
from jax.experimental.pallas import tpu as pltpu

_UNROLL_D_MAX = 64          # fully unroll the pairwise pass up to this D
_MAX_UNROLLED_STMTS = 256   # cap on (chunks per tile) * D for the unrolled path
_MAX_CHUNKS_PER_TILE = 16   # static in-kernel chunk loop -> bounded code size


def _cdiv(a, b):
    return -(-a // b)


def _round_up(a, b):
    return _cdiv(a, b) * b


def _tensorcores_per_device():
    """Best-effort detection of 2-TensorCore (v7x-class) devices."""
    try:
        kind = jax.devices()[0].device_kind.lower()
    except Exception:  # defensive: never fail planning on an odd backend
        return 1
    return 2 if ("v7" in kind or "7x" in kind) else 1


def _chunk_width(d):
    """Lane sub-chunk width: keep ~3 live (d, w) f32 arrays <= ~96 KiB (24 vregs)."""
    return int(max(128, min(1024, ((8192 // max(d, 1)) // 128) * 128)))


def _plan_tiles(d, lanes, pre_blocks, cores):
    """Pick (in-kernel chunk width trc, lane-axis DMA tile width tr)."""
    trc = _chunk_width(d)
    if d <= _UNROLL_D_MAX:
        max_chunks = max(1, min(_MAX_CHUNKS_PER_TILE,
                                _MAX_UNROLLED_STMTS // max(d, 1)))
    else:
        max_chunks = _MAX_CHUNKS_PER_TILE
    tr = min(max_chunks, _cdiv(lanes, trc)) * trc
    if tr >= lanes:
        tr = lanes                      # single full-width lane block (allowed)
    # Only split a single-block problem into >=2 grid steps when the device
    # actually has 2 TensorCores to shard the "parallel" axes over (v7x-class);
    # on v5e/v6e the split would just add grid-step overhead.
    if cores >= 2 and pre_blocks * _cdiv(lanes, tr) < 2 and lanes >= 256:
        tr = min(tr, _round_up(_cdiv(lanes, 2), 128))
    return trc, tr


def _make_kernel(d, tr, trc, unrolled):
    """Sparsemax over axis 1 of a (1, d, tr) block, chunked into trc-wide lane slabs."""
    n_full, tail = divmod(tr, trc)

    def _finish(z, cnt, ssum, o_ref, lo, width):
        # Element j is in the support iff 1 + cnt_j * z_j > ssum_j (tie-inclusive
        # pairwise form of the sorted-prefix condition; exact match, and the max
        # element always passes so supp_size >= 1).
        in_support = (1.0 + cnt * z) > ssum
        supp_size = jnp.sum(in_support.astype(jnp.float32), axis=0, keepdims=True)
        supp_sum = jnp.sum(jnp.where(in_support, z, 0.0), axis=0, keepdims=True)
        # Divide on the (otherwise idle) EUP instead of the VPU; approx=False for
        # strict numerical parity with the reference.
        tau = (supp_sum - 1.0) * pl.reciprocal(supp_size, approx=False)
        o_ref[0, :, lo:lo + width] = jnp.maximum(z - tau, 0.0).astype(o_ref.dtype)

    if unrolled:
        def _chunk(x_ref, o_ref, lo, width):
            z = x_ref[0, :, lo:lo + width].astype(jnp.float32)
            z = z - jnp.max(z, axis=0, keepdims=True)
            cnt = jnp.zeros_like(z)
            ssum = jnp.zeros_like(z)
            for i in range(d):                       # small static D: VPU-only unroll
                zi = z[i:i + 1, :]                   # (1, width) static sublane slice
                cmp = zi >= z
                cnt = cnt + cmp.astype(jnp.float32)
                ssum = ssum + jnp.where(cmp, zi, 0.0)
            _finish(z, cnt, ssum, o_ref, lo, width)

        def kernel(x_ref, o_ref):
            # Static chunk loop: offsets are 128-aligned python ints -> free views.
            for c in range(n_full):
                _chunk(x_ref, o_ref, c * trc, trc)
            if tail:
                _chunk(x_ref, o_ref, n_full * trc, tail)

        return kernel, []

    # Large-D path: accumulators are fori_loop carries (vreg resident); only a
    # (1, width) row of z is re-read from a small VMEM scratch each iteration
    # (no full-block cnt/ssum stores per iteration).
    # TODO(synk): for very large D (>~128) add a tau-bisection variant (~30
    # compare + masked-sum sweeps) to replace this O(D^2) pass entirely.
    def _chunk(x_ref, o_ref, z_scr, lo, width):
        z = x_ref[0, :, lo:lo + width].astype(jnp.float32)
        z = z - jnp.max(z, axis=0, keepdims=True)
        z_scr[:, 0:width] = z

        def body(i, carry):
            cnt, ssum = carry
            zi = z_scr[pl.ds(i, 1), 0:width]         # one tiny row load per step
            cmp = zi >= z
            return (cnt + cmp.astype(jnp.float32),
                    ssum + jnp.where(cmp, zi, 0.0))

        cnt, ssum = lax.fori_loop(
            0, d, body, (jnp.zeros_like(z), jnp.zeros_like(z)), unroll=4)
        _finish(z, cnt, ssum, o_ref, lo, width)

    def kernel(x_ref, o_ref, z_scr):
        for c in range(n_full):
            _chunk(x_ref, o_ref, z_scr, c * trc, trc)
        if tail:
            _chunk(x_ref, o_ref, z_scr, n_full * trc, tail)

    return kernel, [pltpu.VMEM((d, trc), jnp.float32)]


def _sparsemax_pallas(x3, d, lanes, trc, tr, unrolled):
    """Run sparsemax over axis 1 of x3 with shape (P, d, lanes)."""
    pre_blocks = x3.shape[0]
    n_lane_blocks = _cdiv(lanes, tr)
    kernel, scratch = _make_kernel(d, tr, trc, unrolled)

    itemsize = jnp.dtype(x3.dtype).itemsize
    # Double-buffered in + out tiles + looped-path scratch + in-kernel temporaries.
    needed = 4 * d * tr * itemsize + d * trc * 4 + (2 << 20)
    vmem_limit = int(min(48 << 20, max(2 * needed, 16 << 20)))  # safe on v5e..v7x

    return pl.pallas_call(
        kernel,
        out_shape=jax.ShapeDtypeStruct(x3.shape, x3.dtype),
        grid=(pre_blocks, n_lane_blocks),
        in_specs=[pl.BlockSpec((1, d, tr), lambda p, j: (p, 0, j))],
        out_specs=pl.BlockSpec((1, d, tr), lambda p, j: (p, 0, j)),
        scratch_shapes=scratch,
        compiler_params=pltpu.CompilerParams(
            dimension_semantics=("parallel", "parallel"),
            vmem_limit_bytes=vmem_limit),
    )(x3)


def soft_thresholding_operation(x, dim=2, topk=128):
    """Exact sparsemax along `dim` (matches SoftThresholdingOperation.forward)."""
    # TODO(synk): the reference's topk/recursion branch is a runtime shortcut only;
    # this kernel always computes the exact full-support sparsemax.
    del topk
    x = jnp.asarray(x)
    ndim = x.ndim
    dim = dim % ndim
    d = int(x.shape[dim])
    pre = int(math.prod(x.shape[:dim]))
    post = int(math.prod(x.shape[dim + 1:]))
    cores = _tensorcores_per_device()
    unrolled = d <= _UNROLL_D_MAX

    if post >= 128:
        # Transpose folded into the BlockSpec: (pre, d, post) is a free reshape,
        # so only one HBM read + one HBM write total.
        x3 = x.reshape(pre, d, post)
        trc, tr = _plan_tiles(d, post, pre, cores)
        out3 = _sparsemax_pallas(x3, d, post, trc, tr, unrolled)
        return out3.reshape(x.shape)

    # Fallback (dim is the last axis, or trailing dims too narrow for 128-wide
    # lanes): move `dim` to the front and flatten the rest onto the lane axis.
    perm = [dim] + [i for i in range(ndim) if i != dim]
    xt = jnp.transpose(x, perm)
    lead_shape = xt.shape[1:]
    rows = int(math.prod(lead_shape))
    rows_p = _round_up(max(rows, 1), 128)   # full-width unmasked stores everywhere
    x2 = xt.reshape(1, d, rows)
    if rows_p != rows:
        x2 = jnp.pad(x2, ((0, 0), (0, 0), (0, rows_p - rows)))
    trc, tr = _plan_tiles(d, rows_p, 1, cores)
    out2 = _sparsemax_pallas(x2, d, rows_p, trc, tr, unrolled)
    out = out2[:, :, :rows].reshape((d,) + lead_shape)
    inv_perm = [0] * ndim
    for idx, p in enumerate(perm):
        inv_perm[p] = idx
    return jnp.transpose(out, inv_perm)


def _ref_sparsemax(x, dim):
    """Pure-JAX reference mirroring the PyTorch code (full-sort path)."""
    z = x - jnp.max(x, axis=dim, keepdims=True)
    zs = -jnp.sort(-z, axis=dim)                      # descending sort
    cs = jnp.cumsum(zs, axis=dim) - 1.0
    d = x.shape[dim]
    shape = [1] * x.ndim
    shape[dim] = d
    ar = jnp.arange(1, d + 1, dtype=x.dtype).reshape(shape)
    support = ar * zs > cs
    k = jnp.sum(support, axis=dim, keepdims=True)
    tau = jnp.take_along_axis(cs, k.astype(jnp.int32) - 1, axis=dim)
    tau = tau / k.astype(x.dtype)
    return jnp.maximum(z - tau, 0.0)


class SoftThresholdingOperation:
    """JAX/Pallas equivalent of the PyTorch module (forward only)."""

    def __init__(self, dim=2, topk=128):
        self.dim = dim
        self.topk = topk
        self._fn = jax.jit(functools.partial(
            soft_thresholding_operation, dim=dim, topk=topk))

    def __call__(self, x):
        return self._fn(x)


if __name__ == "__main__":
    key_a, key_b, key_c = jax.random.split(jax.random.PRNGKey(0), 3)

    # 1) NCHW input, reduce over H (dim=2): post=16<128 -> transpose fallback,
    #    unrolled small-D kernel.
    x = jax.random.normal(key_a, (2, 4, 16, 16), dtype=jnp.float32)
    out = jax.block_until_ready(SoftThresholdingOperation(dim=2, topk=128)(x))
    ref = _ref_sparsemax(x, dim=2)
    assert out.shape == x.shape and out.dtype == x.dtype
    assert jnp.allclose(out, ref, atol=1e-5, rtol=1e-5), "mismatch (D=16, fallback)"
    assert jnp.allclose(jnp.sum(out, axis=2), 1.0, atol=1e-4)

    # 2) Last-axis reduction, D=96: transpose fallback, looped (fori_loop) kernel.
    y = jax.random.normal(key_b, (4, 64, 96), dtype=jnp.float32)
    out_y = jax.block_until_ready(SoftThresholdingOperation(dim=2, topk=128)(y))
    ref_y = _ref_sparsemax(y, dim=2)
    assert jnp.allclose(out_y, ref_y, atol=1e-5, rtol=1e-5), "mismatch (D=96)"
    assert jnp.allclose(jnp.sum(out_y, axis=2), 1.0, atol=1e-4)

    # 3) Middle-axis reduction with wide trailing dims (post=256>=128):
    #    exercises the transpose-free BlockSpec-folded path.
    w = jax.random.normal(key_c, (2, 16, 4, 64), dtype=jnp.float32)
    out_w = jax.block_until_ready(SoftThresholdingOperation(dim=1, topk=128)(w))
    ref_w = _ref_sparsemax(w, dim=1)
    assert jnp.allclose(out_w, ref_w, atol=1e-5, rtol=1e-5), "mismatch (dim=1 path)"
    assert jnp.allclose(jnp.sum(out_w, axis=1), 1.0, atol=1e-4)

    print("KERNEL_OK")
</pallas_src>

<mosaic_0001>
module attributes {stable_mosaic.version = 11 : i64} {
  func.func @kernel(%arg0: i32, %arg1: i32, %arg2: memref<1x16x128xf32, #tpu.memory_space<vmem>>, %arg3: memref<1x16x128xf32, #tpu.memory_space<vmem>>) attributes {dimension_semantics = [#tpu.dimension_semantics<parallel>, #tpu.dimension_semantics<parallel>], iteration_bounds = array<i64: 1, 1>, scalar_prefetch = 0 : i64, scratch_operands = 0 : i64, tpu.core_type = #tpu.core_type<tc>, window_params = [{transform_indices = @transform_0, window_bounds = array<i64: 1, 16, 128>}, {transform_indices = @transform_1, window_bounds = array<i64: 1, 16, 128>}]} {
    %c0 = arith.constant 0 : index
    %c0_0 = arith.constant 0 : index
    %c0_1 = arith.constant 0 : index
    %0 = vector.load %arg2[%c0, %c0_0, %c0_1] : memref<1x16x128xf32, #tpu.memory_space<vmem>>, vector<1x16x128xf32>
    %1 = vector.shape_cast %0 : vector<1x16x128xf32> to vector<16x128xf32>
    %cst = arith.constant dense<0xFF800000> : vector<128xf32>
    %2 = vector.multi_reduction <maximumf>, %1, %cst [0] : vector<16x128xf32> to vector<128xf32>
    %3 = vector.shape_cast %2 : vector<128xf32> to vector<1x128xf32>
    %4 = vector.broadcast %3 : vector<1x128xf32> to vector<16x128xf32>
    %5 = arith.subf %1, %4 : vector<16x128xf32>
    %cst_2 = arith.constant 0.000000e+00 : f32
    %6 = vector.broadcast %cst_2 : f32 to vector<16x128xf32>
    %cst_3 = arith.constant 0.000000e+00 : f32
    %7 = vector.broadcast %cst_3 : f32 to vector<16x128xf32>
    %8 = vector.extract_strided_slice %5 {offsets = [0, 0], sizes = [1, 128], strides = [1, 1]} : vector<16x128xf32> to vector<1x128xf32>
    %9 = vector.broadcast %8 : vector<1x128xf32> to vector<16x128xf32>
    %10 = arith.cmpf oge, %9, %5 : vector<16x128xf32>
    %11 = arith.extui %10 : vector<16x128xi1> to vector<16x128xi32>
    %12 = arith.sitofp %11 : vector<16x128xi32> to vector<16x128xf32>
    %13 = arith.addf %6, %12 : vector<16x128xf32>
    %cst_4 = arith.constant 0.000000e+00 : f32
    %14 = vector.shape_cast %8 : vector<1x128xf32> to vector<1x128xf32>
    %15 = vector.broadcast %14 : vector<1x128xf32> to vector<16x128xf32>
    %16 = vector.broadcast %cst_4 : f32 to vector<16x128xf32>
    %17 = arith.select %10, %15, %16 : vector<16x128xi1>, vector<16x128xf32>
    %18 = arith.addf %7, %17 : vector<16x128xf32>
    %19 = vector.extract_strided_slice %5 {offsets = [1, 0], sizes = [1, 128], strides = [1, 1]} : vector<16x128xf32> to vector<1x128xf32>
    %20 = vector.broadcast %19 : vector<1x128xf32> to vector<16x128xf32>
    %21 = arith.cmpf oge, %20, %5 : vector<16x128xf32>
    %22 = arith.extui %21 : vector<16x128xi1> to vector<16x128xi32>
    %23 = arith.sitofp %22 : vector<16x128xi32> to vector<16x128xf32>
    %24 = arith.addf %13, %23 : vector<16x128xf32>
    %cst_5 = arith.constant 0.000000e+00 : f32
    %25 = vector.shape_cast %19 : vector<1x128xf32> to vector<1x128xf32>
    %26 = vector.broadcast %25 : vector<1x128xf32> to vector<16x128xf32>
    %27 = vector.broadcast %cst_5 : f32 to vector<16x128xf32>
    %28 = arith.select %21, %26, %27 : vector<16x128xi1>, vector<16x128xf32>
    %29 = arith.addf %18, %28 : vector<16x128xf32>
    %30 = vector.extract_strided_slice %5 {offsets = [2, 0], sizes = [1, 128], strides = [1, 1]} : vector<16x128xf32> to vector<1x128xf32>
    %31 = vector.broadcast %30 : vector<1x128xf32> to vector<16x128xf32>
    %32 = arith.cmpf oge, %31, %5 : vector<16x128xf32>
    %33 = arith.extui %32 : vector<16x128xi1> to vector<16x128xi32>
    %34 = arith.sitofp %33 : vector<16x128xi32> to vector<16x128xf32>
    %35 = arith.addf %24, %34 : vector<16x128xf32>
    %cst_6 = arith.constant 0.000000e+00 : f32
    %36 = vector.shape_cast %30 : vector<1x128xf32> to vector<1x128xf32>
    %37 = vector.broadcast %36 : vector<1x128xf32> to vector<16x128xf32>
    %38 = vector.broadcast %cst_6 : f32 to vector<16x128xf32>
    %39 = arith.select %32, %37, %38 : vector<16x128xi1>, vector<16x128xf32>
    %40 = arith.addf %29, %39 : vector<16x128xf32>
    %41 = vector.extract_strided_slice %5 {offsets = [3, 0], sizes = [1, 128], strides = [1, 1]} : vector<16x128xf32> to vector<1x128xf32>
    %42 = vector.broadcast %41 : vector<1x128xf32> to vector<16x128xf32>
    %43 = arith.cmpf oge, %42, %5 : vector<16x128xf32>
    %44 = arith.extui %43 : vector<16x128xi1> to vector<16x128xi32>
    %45 = arith.sitofp %44 : vector<16x128xi32> to vector<16x128xf32>
    %46 = arith.addf %35, %45 : vector<16x128xf32>
    %cst_7 = arith.constant 0.000000e+00 : f32
    %47 = vector.shape_cast %41 : vector<1x128xf32> to vector<1x128xf32>
    %48 = vector.broadcast %47 : vector<1x128xf32> to vector<16x128xf32>
    %49 = vector.broadcast %cst_7 : f32 to vector<16x128xf32>
    %50 = arith.select %43, %48, %49 : vector<16x128xi1>, vector<16x128xf32>
    %51 = arith.addf %40, %50 : vector<16x128xf32>
    %52 = vector.extract_strided_slice %5 {offsets = [4, 0], sizes = [1, 128], strides = [1, 1]} : vector<16x128xf32> to vector<1x128xf32>
    %53 = vector.broadcast %52 : vector<1x128xf32> to vector<16x128xf32>
    %54 = arith.cmpf oge, %53, %5 : vector<16x128xf32>
    %55 = arith.extui %54 : vector<16x128xi1> to vector<16x128xi32>
    %56 = arith.sitofp %55 : vector<16x128xi32> to vector<16x128xf32>
    %57 = arith.addf %46, %56 : vector<16x128xf32>
    %cst_8 = arith.constant 0.000000e+00 : f32
    %58 = vector.shape_cast %52 : vector<1x128xf32> to vector<1x128xf32>
    %59 = vector.broadcast %58 : vector<1x128xf32> to vector<16x128xf32>
    %60 = vector.broadcast %cst_8 : f32 to vector<16x128xf32>
    %61 = arith.select %54, %59, %60 : vector<16x128xi1>, vector<16x128xf32>
    %62 = arith.addf %51, %61 : vector<16x128xf32>
    %63 = vector.extract_strided_slice %5 {offsets = [5, 0], sizes = [1, 128], strides = [1, 1]} : vector<16x128xf32> to vector<1x128xf32>
    %64 = vector.broadcast %63 : vector<1x128xf32> to vector<16x128xf32>
    %65 = arith.cmpf oge, %64, %5 : vector<16x128xf32>
    %66 = arith.extui %65 : vector<16x128xi1> to vector<16x128xi32>
    %67 = arith.sitofp %66 : vector<16x128xi32> to vector<16x128xf32>
    %68 = arith.addf %57, %67 : vector<16x128xf32>
    %cst_9 = arith.constant 0.000000e+00 : f32
    %69 = vector.shape_cast %63 : vector<1x128xf32> to vector<1x128xf32>
    %70 = vector.broadcast %69 : vector<1x128xf32> to vector<16x128xf32>
    %71 = vector.broadcast %cst_9 : f32 to vector<16x128xf32>
    %72 = arith.select %65, %70, %71 : vector<16x128xi1>, vector<16x128xf32>
    %73 = arith.addf %62, %72 : vector<16x128xf32>
    %74 = vector.extract_strided_slice %5 {offsets = [6, 0], sizes = [1, 128], strides = [1, 1]} : vector<16x128xf32> to vector<1x128xf32>
    %75 = vector.broadcast %74 : vector<1x128xf32> to vector<16x128xf32>
    %76 = arith.cmpf oge, %75, %5 : vector<16x128xf32>
    %77 = arith.extui %76 : vector<16x128xi1> to vector<16x128xi32>
    %78 = arith.sitofp %77 : vector<16x128xi32> to vector<16x128xf32>
    %79 = arith.addf %68, %78 : vector<16x128xf32>
    %cst_10 = arith.constant 0.000000e+00 : f32
    %80 = vector.shape_cast %74 : vector<1x128xf32> to vector<1x128xf32>
    %81 = vector.broadcast %80 : vector<1x128xf32> to vector<16x128xf32>
    %82 = vector.broadcast %cst_10 : f32 to vector<16x128xf32>
    %83 = arith.select %76, %81, %82 : vector<16x128xi1>, vector<16x128xf32>
    %84 = arith.addf %73, %83 : vector<16x128xf32>
    %85 = vector.extract_strided_slice %5 {offsets = [7, 0], sizes = [1, 128], strides = [1, 1]} : vector<16x128xf32> to vector<1x128xf32>
    %86 = vector.broadcast %85 : vector<1x128xf32> to vector<16x128xf32>
    %87 = arith.cmpf oge, %86, %5 : vector<16x128xf32>
    %88 = arith.extui %87 : vector<16x128xi1> to vector<16x128xi32>
    %89 = arith.sitofp %88 : vector<16x128xi32> to vector<16x128xf32>
    %90 = arith.addf %79, %89 : vector<16x128xf32>
    %cst_11 = arith.constant 0.000000e+00 : f32
    %91 = vector.shape_cast %85 : vector<1x128xf32> to vector<1x128xf32>
    %92 = vector.broadcast %91 : vector<1x128xf32> to vector<16x128xf32>
    %93 = vector.broadcast %cst_11 : f32 to vector<16x128xf32>
    %94 = arith.select %87, %92, %93 : vector<16x128xi1>, vector<16x128xf32>
    %95 = arith.addf %84, %94 : vector<16x128xf32>
    %96 = vector.extract_strided_slice %5 {offsets = [8, 0], sizes = [1, 128], strides = [1, 1]} : vector<16x128xf32> to vector<1x128xf32>
    %97 = vector.broadcast %96 : vector<1x128xf32> to vector<16x128xf32>
    %98 = arith.cmpf oge, %97, %5 : vector<16x128xf32>
    %99 = arith.extui %98 : vector<16x128xi1> to vector<16x128xi32>
    %100 = arith.sitofp %99 : vector<16x128xi32> to vector<16x128xf32>
    %101 = arith.addf %90, %100 : vector<16x128xf32>
    %cst_12 = arith.constant 0.000000e+00 : f32
    %102 = vector.shape_cast %96 : vector<1x128xf32> to vector<1x128xf32>
    %103 = vector.broadcast %102 : vector<1x128xf32> to vector<16x128xf32>
    %104 = vector.broadcast %cst_12 : f32 to vector<16x128xf32>
    %105 = arith.select %98, %103, %104 : vector<16x128xi1>, vector<16x128xf32>
    %106 = arith.addf %95, %105 : vector<16x128xf32>
    %107 = vector.extract_strided_slice %5 {offsets = [9, 0], sizes = [1, 128], strides = [1, 1]} : vector<16x128xf32> to vector<1x128xf32>
    %108 = vector.broadcast %107 : vector<1x128xf32> to vector<16x128xf32>
    %109 = arith.cmpf oge, %108, %5 : vector<16x128xf32>
    %110 = arith.extui %109 : vector<16x128xi1> to vector<16x128xi32>
    %111 = arith.sitofp %110 : vector<16x128xi32> to vector<16x128xf32>
    %112 = arith.addf %101, %111 : vector<16x128xf32>
    %cst_13 = arith.constant 0.000000e+00 : f32
    %113 = vector.shape_cast %107 : vector<1x128xf32> to vector<1x128xf32>
    %114 = vector.broadcast %113 : vector<1x128xf32> to vector<16x128xf32>
    %115 = vector.broadcast %cst_13 : f32 to vector<16x128xf32>
    %116 = arith.select %109, %114, %115 : vector<16x128xi1>, vector<16x128xf32>
    %117 = arith.addf %106, %116 : vector<16x128xf32>
    %118 = vector.extract_strided_slice %5 {offsets = [10, 0], sizes = [1, 128], strides = [1, 1]} : vector<16x128xf32> to vector<1x128xf32>
    %119 = vector.broadcast %118 : vector<1x128xf32> to vector<16x128xf32>
    %120 = arith.cmpf oge, %119, %5 : vector<16x128xf32>
    %121 = arith.extui %120 : vector<16x128xi1> to vector<16x128xi32>
    %122 = arith.sitofp %121 : vector<16x128xi32> to vector<16x128xf32>
    %123 = arith.addf %112, %122 : vector<16x128xf32>
    %cst_14 = arith.constant 0.000000e+00 : f32
    %124 = vector.shape_cast %118 : vector<1x128xf32> to vector<1x128xf32>
    %125 = vector.broadcast %124 : vector<1x128xf32> to vector<16x128xf32>
    %126 = vector.broadcast %cst_14 : f32 to vector<16x128xf32>
    %127 = arith.select %120, %125, %126 : vector<16x128xi1>, vector<16x128xf32>
    %128 = arith.addf %117, %127 : vector<16x128xf32>
    %129 = vector.extract_strided_slice %5 {offsets = [11, 0], sizes = [1, 128], strides = [1, 1]} : vector<16x128xf32> to vector<1x128xf32>
    %130 = vector.broadcast %129 : vector<1x128xf32> to vector<16x128xf32>
    %131 = arith.cmpf oge, %130, %5 : vector<16x128xf32>
    %132 = arith.extui %131 : vector<16x128xi1> to vector<16x128xi32>
    %133 = arith.sitofp %132 : vector<16x128xi32> to vector<16x128xf32>
    %134 = arith.addf %123, %133 : vector<16x128xf32>
    %cst_15 = arith.constant 0.000000e+00 : f32
    %135 = vector.shape_cast %129 : vector<1x128xf32> to vector<1x128xf32>
    %136 = vector.broadcast %135 : vector<1x128xf32> to vector<16x128xf32>
    %137 = vector.broadcast %cst_15 : f32 to vector<16x128xf32>
    %138 = arith.select %131, %136, %137 : vector<16x128xi1>, vector<16x128xf32>
    %139 = arith.addf %128, %138 : vector<16x128xf32>
    %140 = vector.extract_strided_slice %5 {offsets = [12, 0], sizes = [1, 128], strides = [1, 1]} : vector<16x128xf32> to vector<1x128xf32>
    %141 = vector.broadcast %140 : vector<1x128xf32> to vector<16x128xf32>
    %142 = arith.cmpf oge, %141, %5 : vector<16x128xf32>
    %143 = arith.extui %142 : vector<16x128xi1> to vector<16x128xi32>
    %144 = arith.sitofp %143 : vector<16x128xi32> to vector<16x128xf32>
    %145 = arith.addf %134, %144 : vector<16x128xf32>
    %cst_16 = arith.constant 0.000000e+00 : f32
    %146 = vector.shape_cast %140 : vector<1x128xf32> to vector<1x128xf32>
    %147 = vector.broadcast %146 : vector<1x128xf32> to vector<16x128xf32>
    %148 = vector.broadcast %cst_16 : f32 to vector<16x128xf32>
    %149 = arith.select %142, %147, %148 : vector<16x128xi1>, vector<16x128xf32>
    %150 = arith.addf %139, %149 : vector<16x128xf32>
    %151 = vector.extract_strided_slice %5 {offsets = [13, 0], sizes = [1, 128], strides = [1, 1]} : vector<16x128xf32> to vector<1x128xf32>
    %152 = vector.broadcast %151 : vector<1x128xf32> to vector<16x128xf32>
    %153 = arith.cmpf oge, %152, %5 : vector<16x128xf32>
    %154 = arith.extui %153 : vector<16x128xi1> to vector<16x128xi32>
    %155 = arith.sitofp %154 : vector<16x128xi32> to vector<16x128xf32>
    %156 = arith.addf %145, %155 : vector<16x128xf32>
    %cst_17 = arith.constant 0.000000e+00 : f32
    %157 = vector.shape_cast %151 : vector<1x128xf32> to vector<1x128xf32>
    %158 = vector.broadcast %157 : vector<1x128xf32> to vector<16x128xf32>
    %159 = vector.broadcast %cst_17 : f32 to vector<16x128xf32>
    %160 = arith.select %153, %158, %159 : vector<16x128xi1>, vector<16x128xf32>
    %161 = arith.addf %150, %160 : vector<16x128xf32>
    %162 = vector.extract_strided_slice %5 {offsets = [14, 0], sizes = [1, 128], strides = [1, 1]} : vector<16x128xf32> to vector<1x128xf32>
    %163 = vector.broadcast %162 : vector<1x128xf32> to vector<16x128xf32>
    %164 = arith.cmpf oge, %163, %5 : vector<16x128xf32>
    %165 = arith.extui %164 : vector<16x128xi1> to vector<16x128xi32>
    %166 = arith.sitofp %165 : vector<16x128xi32> to vector<16x128xf32>
    %167 = arith.addf %156, %166 : vector<16x128xf32>
    %cst_18 = arith.constant 0.000000e+00 : f32
    %168 = vector.shape_cast %162 : vector<1x128xf32> to vector<1x128xf32>
    %169 = vector.broadcast %168 : vector<1x128xf32> to vector<16x128xf32>
    %170 = vector.broadcast %cst_18 : f32 to vector<16x128xf32>
    %171 = arith.select %164, %169, %170 : vector<16x128xi1>, vector<16x128xf32>
    %172 = arith.addf %161, %171 : vector<16x128xf32>
    %173 = vector.extract_strided_slice %5 {offsets = [15, 0], sizes = [1, 128], strides = [1, 1]} : vector<16x128xf32> to vector<1x128xf32>
    %174 = vector.broadcast %173 : vector<1x128xf32> to vector<16x128xf32>
    %175 = arith.cmpf oge, %174, %5 : vector<16x128xf32>
    %176 = arith.extui %175 : vector<16x128xi1> to vector<16x128xi32>
    %177 = arith.sitofp %176 : vector<16x128xi32> to vector<16x128xf32>
    %178 = arith.addf %167, %177 : vector<16x128xf32>
    %cst_19 = arith.constant 0.000000e+00 : f32
    %179 = vector.shape_cast %173 : vector<1x128xf32> to vector<1x128xf32>
    %180 = vector.broadcast %179 : vector<1x128xf32> to vector<16x128xf32>
    %181 = vector.broadcast %cst_19 : f32 to vector<16x128xf32>
    %182 = arith.select %175, %180, %181 : vector<16x128xi1>, vector<16x128xf32>
    %183 = arith.addf %172, %182 : vector<16x128xf32>
    %184 = arith.mulf %178, %5 : vector<16x128xf32>
    %cst_20 = arith.constant 1.000000e+00 : f32
    %185 = vector.broadcast %cst_20 : f32 to vector<16x128xf32>
    %186 = arith.addf %185, %184 : vector<16x128xf32>
    %187 = arith.cmpf ogt, %186, %183 : vector<16x128xf32>
    %188 = arith.extui %187 : vector<16x128xi1> to vector<16x128xi32>
    %189 = arith.sitofp %188 : vector<16x128xi32> to vector<16x128xf32>
    %cst_21 = arith.constant dense<0.000000e+00> : vector<128xf32>
    %190 = vector.multi_reduction <add>, %189, %cst_21 [0] : vector<16x128xf32> to vector<128xf32>
    %191 = vector.shape_cast %190 : vector<128xf32> to vector<1x128xf32>
    %cst_22 = arith.constant 0.000000e+00 : f32
    %192 = vector.broadcast %cst_22 : f32 to vector<16x128xf32>
    %193 = arith.select %187, %5, %192 : vector<16x128xi1>, vector<16x128xf32>
    %cst_23 = arith.constant dense<0.000000e+00> : vector<128xf32>
    %194 = vector.multi_reduction <add>, %193, %cst_23 [0] : vector<16x128xf32> to vector<128xf32>
    %195 = vector.shape_cast %194 : vector<128xf32> to vector<1x128xf32>
    %cst_24 = arith.constant 1.000000e+00 : f32
    %196 = vector.broadcast %cst_24 : f32 to vector<1x128xf32>
    %197 = arith.subf %195, %196 : vector<1x128xf32>
    %198 = tpu.reciprocal %191 : vector<1x128xf32> -> vector<1x128xf32>
    %199 = arith.mulf %197, %198 : vector<1x128xf32>
    %200 = vector.broadcast %199 : vector<1x128xf32> to vector<16x128xf32>
    %201 = arith.subf %5, %200 : vector<16x128xf32>
    %cst_25 = arith.constant 0.000000e+00 : f32
    %202 = vector.broadcast %cst_25 : f32 to vector<16x128xf32>
    %203 = arith.maximumf %201, %202 : vector<16x128xf32>
    %c0_26 = arith.constant 0 : index
    %c0_27 = arith.constant 0 : index
    %c0_28 = arith.constant 0 : index
    %204 = vector.load %arg3[%c0_26, %c0_27, %c0_28] : memref<1x16x128xf32, #tpu.memory_space<vmem>>, vector<1x16x128xf32>
    %205 = vector.shape_cast %204 : vector<1x16x128xf32> to vector<16x128xf32>
    %206 = vector.shape_cast %203 : vector<16x128xf32> to vector<1x16x128xf32>
    tpu.vector_store %arg3[%c0_26, %c0_27, %c0_28], %206 {strides = array<i32>} : memref<1x16x128xf32, #tpu.memory_space<vmem>>, vector<1x16x128xf32>,
    return
  }
  func.func @transform_0(%arg0: i32, %arg1: i32) -> (i32, i32, i32) {
    %c0_i32 = arith.constant 0 : i32
    %c0_i32_0 = arith.constant 0 : i32
    return %arg0, %c0_i32, %arg1 : i32, i32, i32
  }
  func.func @transform_1(%arg0: i32, %arg1: i32) -> (i32, i32, i32) {
    %c0_i32 = arith.constant 0 : i32
    %c0_i32_0 = arith.constant 0 : i32
    return %arg0, %c0_i32, %arg1 : i32, i32, i32
  }
}

</mosaic_0001>

<llo_original>
// kernel: soft_thresholding_operation.1
$region0: #{soft_thresholding_operation.1}
  #allocation0 [shape = 'u32[]', space=smem, size = 0x4, offset = 0x4, fixed_abs, tag = 'smem constant byte address 0x4 - core index']
  #allocation1 [shape = 'u32[144,128]{1,0:T(1,128)}', space=vmem, size = 0x12000, scoped, tag = 'internal scratch']
  %s0 = inlined_call_operand.vmem [shape: f32[1,16,128], index: 0, kind: input, shape index: {}]
  %s1 = inlined_call_operand.vmem [shape: f32[1,16,128], index: 1, kind: output, shape index: {}]
  %s2 = sld [smem:[#allocation0]]
  $region14: #{soft_thresholding_operation.1} parent=0
    _
  %s4 = ssub.s32 1, %s2
  %s5 = scalar_select 0, %s4, %s2
  // Predicated region
  $region2: #{soft_thresholding_operation.1} parent=0 // pred_check
    _
  $region3: #{soft_thresholding_operation.1} parent=0 // pred_check_branch
    %7 = sbr.rel (0) target = $region5
  $region4: #{soft_thresholding_operation.1} parent=0 // pred_region
    _
  $region5: #{soft_thresholding_operation.1} parent=0 // pred_fallthru
    _
  %v8 = vld [vmem:[%s0] sm:$0xff]
  %v9 = vld [vmem:[%s0 + $0x8] sm:$0xff]
  %v10 = vmax.f32 %v8, %v9
  %v11 = vrot.slane %v10, 4
  %v12 = vmax.f32 %v10, %v11
  %v13 = vrot.slane %v12, 2
  %v14 = vmax.f32 %v12, %v13
  %v15 = vrot.slane %v14, 1
  %v16 = vmax.f32 %v14, %v15
  %v17 = vsub.f32 %v8, %v16
  %v18 = vsub.f32 %v9, %v16
  %v19 = vlaneseq
  %v20 = vshrl.u32 %v19, 7
  %v21 = vsub.s32 0, %v20
  %v22 = vrot.slane %v17, %v21
  %vm23 = vcmp.ge.f32.partialorder %v22, %v17
  %vm24 = vcmp.ge.f32.partialorder %v22, %v18
  %v25 = vsel %vm23, 1, 0
  %v26 = vsel %vm24, 1, 0
  %v27 = vcvt.s32.f32 %v25
  %v28 = vcvt.s32.f32 %v26
  %v29 = vadd.f32 %v27, 0.0
  %v30 = vadd.f32 %v28, 0.0
  %v31 = vsel %vm23, %v22, 0.0
  %v32 = vsel %vm24, %v22, 0.0
  %v33 = vadd.f32 %v31, 0.0
  %v34 = vadd.f32 %v32, 0.0
  %v35 = vlaneseq
  %v36 = vshrl.u32 %v35, 7
  %v37 = vsub.s32 1, %v36
  %v38 = vrot.slane %v17, %v37
  %vm39 = vcmp.ge.f32.partialorder %v38, %v17
  %vm40 = vcmp.ge.f32.partialorder %v38, %v18
  %v41 = vsel %vm39, 1, 0
  %v42 = vsel %vm40, 1, 0
  %v43 = vcvt.s32.f32 %v41
  %v44 = vcvt.s32.f32 %v42
  %v45 = vadd.f32 %v29, %v43
  %v46 = vadd.f32 %v30, %v44
  %v47 = vsel %vm39, %v38, 0.0
  %v48 = vsel %vm40, %v38, 0.0
  %v49 = vadd.f32 %v33, %v47
  %v50 = vadd.f32 %v34, %v48
  %v51 = vlaneseq
  %v52 = vshrl.u32 %v51, 7
  %v53 = vsub.s32 2, %v52
  %v54 = vrot.slane %v17, %v53
  %vm55 = vcmp.ge.f32.partialorder %v54, %v17
  %vm56 = vcmp.ge.f32.partialorder %v54, %v18
  %v57 = vsel %vm55, 1, 0
  %v58 = vsel %vm56, 1, 0
  %v59 = vcvt.s32.f32 %v57
  %v60 = vcvt.s32.f32 %v58
  %v61 = vadd.f32 %v45, %v59
  %v62 = vadd.f32 %v46, %v60
  %v63 = vsel %vm55, %v54, 0.0
  %v64 = vsel %vm56, %v54, 0.0
  %v65 = vadd.f32 %v49, %v63
  %v66 = vadd.f32 %v50, %v64
  %v67 = vlaneseq
  %v68 = vshrl.u32 %v67, 7
  %v69 = vsub.s32 3, %v68
  %v70 = vrot.slane %v17, %v69
  %vm71 = vcmp.ge.f32.partialorder %v70, %v17
  %vm72 = vcmp.ge.f32.partialorder %v70, %v18
  %v73 = vsel %vm71, 1, 0
  %v74 = vsel %vm72, 1, 0
  %v75 = vcvt.s32.f32 %v73
  %v76 = vcvt.s32.f32 %v74
  %v77 = vadd.f32 %v61, %v75
  %v78 = vadd.f32 %v62, %v76
  %v79 = vsel %vm71, %v70, 0.0
  %v80 = vsel %vm72, %v70, 0.0
  %v81 = vadd.f32 %v65, %v79
  %v82 = vadd.f32 %v66, %v80
  %v83 = vlaneseq
  %v84 = vshrl.u32 %v83, 7
  %v85 = vsub.s32 4, %v84
  %v86 = vrot.slane %v17, %v85
  %vm87 = vcmp.ge.f32.partialorder %v86, %v17
  %vm88 = vcmp.ge.f32.partialorder %v86, %v18
  %v89 = vsel %vm87, 1, 0
  %v90 = vsel %vm88, 1, 0
  %v91 = vcvt.s32.f32 %v89
  %v92 = vcvt.s32.f32 %v90
  %v93 = vadd.f32 %v77, %v91
  %v94 = vadd.f32 %v78, %v92
  %v95 = vsel %vm87, %v86, 0.0
  %v96 = vsel %vm88, %v86, 0.0
  %v97 = vadd.f32 %v81, %v95
  %v98 = vadd.f32 %v82, %v96
  %v99 = vlaneseq
  %v100 = vshrl.u32 %v99, 7
  %v101 = vsub.s32 5, %v100
  %v102 = vrot.slane %v17, %v101
  %vm103 = vcmp.ge.f32.partialorder %v102, %v17
  %vm104 = vcmp.ge.f32.partialorder %v102, %v18
  %v105 = vsel %vm103, 1, 0
  %v106 = vsel %vm104, 1, 0
  %v107 = vcvt.s32.f32 %v105
  %v108 = vcvt.s32.f32 %v106
  %v109 = vadd.f32 %v93, %v107
  %v110 = vadd.f32 %v94, %v108
  %v111 = vsel %vm103, %v102, 0.0
  %v112 = vsel %vm104, %v102, 0.0
  %v113 = vadd.f32 %v97, %v111
  %v114 = vadd.f32 %v98, %v112
  %v115 = vlaneseq
  %v116 = vshrl.u32 %v115, 7
  %v117 = vsub.s32 6, %v116
  %v118 = vrot.slane %v17, %v117
  %vm119 = vcmp.ge.f32.partialorder %v118, %v17
  %vm120 = vcmp.ge.f32.partialorder %v118, %v18
  %v121 = vsel %vm119, 1, 0
  %v122 = vsel %vm120, 1, 0
  %v123 = vcvt.s32.f32 %v121
  %v124 = vcvt.s32.f32 %v122
  %v125 = vadd.f32 %v109, %v123
  %v126 = vadd.f32 %v110, %v124
  %v127 = vsel %vm119, %v118, 0.0
  %v128 = vsel %vm120, %v118, 0.0
  %v129 = vadd.f32 %v113, %v127
  %v130 = vadd.f32 %v114, %v128
  %v131 = vlaneseq
  %v132 = vshrl.u32 %v131, 7
  %v133 = vsub.s32 7, %v132
  %v134 = vrot.slane %v17, %v133
  %vm135 = vcmp.ge.f32.partialorder %v134, %v17
  %vm136 = vcmp.ge.f32.partialorder %v134, %v18
  %v137 = vsel %vm135, 1, 0
  %v138 = vsel %vm136, 1, 0
  %v139 = vcvt.s32.f32 %v137
  %v140 = vcvt.s32.f32 %v138
  %v141 = vadd.f32 %v125, %v139
  %v142 = vadd.f32 %v126, %v140
  %v143 = vsel %vm135, %v134, 0.0
  %v144 = vsel %vm136, %v134, 0.0
  %v145 = vadd.f32 %v129, %v143
  %v146 = vadd.f32 %v130, %v144
  %v147 = vlaneseq
  %v148 = vshrl.u32 %v147, 7
  %v149 = vsub.s32 0, %v148
  %v150 = vrot.slane %v18, %v149
  %vm151 = vcmp.ge.f32.partialorder %v150, %v17
  %vm152 = vcmp.ge.f32.partialorder %v150, %v18
  %v153 = vsel %vm151, 1, 0
  %v154 = vsel %vm152, 1, 0
  %v155 = vcvt.s32.f32 %v153
  %v156 = vcvt.s32.f32 %v154
  %v157 = vadd.f32 %v141, %v155
  %v158 = vadd.f32 %v142, %v156
  %v159 = vsel %vm151, %v150, 0.0
  %v160 = vsel %vm152, %v150, 0.0
  %v161 = vadd.f32 %v145, %v159
  %v162 = vadd.f32 %v146, %v160
  %v163 = vlaneseq
  %v164 = vshrl.u32 %v163, 7
  %v165 = vsub.s32 1, %v164
  %v166 = vrot.slane %v18, %v165
  %vm167 = vcmp.ge.f32.partialorder %v166, %v17
  %vm168 = vcmp.ge.f32.partialorder %v166, %v18
  %v169 = vsel %vm167, 1, 0
  %v170 = vsel %vm168, 1, 0
  %v171 = vcvt.s32.f32 %v169
  %v172 = vcvt.s32.f32 %v170
  %v173 = vadd.f32 %v157, %v171
  %v174 = vadd.f32 %v158, %v172
  %v175 = vsel %vm167, %v166, 0.0
  %v176 = vsel %vm168, %v166, 0.0
  %v177 = vadd.f32 %v161, %v175
  %v178 = vadd.f32 %v162, %v176
  %v179 = vlaneseq
  %v180 = vshrl.u32 %v179, 7
  %v181 = vsub.s32 2, %v180
  %v182 = vrot.slane %v18, %v181
  %vm183 = vcmp.ge.f32.partialorder %v182, %v17
  %vm184 = vcmp.ge.f32.partialorder %v182, %v18
  %v185 = vsel %vm183, 1, 0
  %v186 = vsel %vm184, 1, 0
  %v187 = vcvt.s32.f32 %v185
  %v188 = vcvt.s32.f32 %v186
  %v189 = vadd.f32 %v173, %v187
  %v190 = vadd.f32 %v174, %v188
  %v191 = vsel %vm183, %v182, 0.0
  %v192 = vsel %vm184, %v182, 0.0
  %v193 = vadd.f32 %v177, %v191
  %v194 = vadd.f32 %v178, %v192
  %v195 = vlaneseq
  %v196 = vshrl.u32 %v195, 7
  %v197 = vsub.s32 3, %v196
  %v198 = vrot.slane %v18, %v197
  %vm199 = vcmp.ge.f32.partialorder %v198, %v17
  %vm200 = vcmp.ge.f32.partialorder %v198, %v18
  %v201 = vsel %vm199, 1, 0
  %v202 = vsel %vm200, 1, 0
  %v203 = vcvt.s32.f32 %v201
  %v204 = vcvt.s32.f32 %v202
  %v205 = vadd.f32 %v189, %v203
  %v206 = vadd.f32 %v190, %v204
  %v207 = vsel %vm199, %v198, 0.0
  %v208 = vsel %vm200, %v198, 0.0
  %v209 = vadd.f32 %v193, %v207
  %v210 = vadd.f32 %v194, %v208
  %v211 = vlaneseq
  %v212 = vshrl.u32 %v211, 7
  %v213 = vsub.s32 4, %v212
  %v214 = vrot.slane %v18, %v213
  %vm215 = vcmp.ge.f32.partialorder %v214, %v17
  %vm216 = vcmp.ge.f32.partialorder %v214, %v18
  %v217 = vsel %vm215, 1, 0
  %v218 = vsel %vm216, 1, 0
  %v219 = vcvt.s32.f32 %v217
  %v220 = vcvt.s32.f32 %v218
  %v221 = vadd.f32 %v205, %v219
  %v222 = vadd.f32 %v206, %v220
  %v223 = vsel %vm215, %v214, 0.0
  %v224 = vsel %vm216, %v214, 0.0
  %v225 = vadd.f32 %v209, %v223
  %v226 = vadd.f32 %v210, %v224
  %v227 = vlaneseq
  %v228 = vshrl.u32 %v227, 7
  %v229 = vsub.s32 5, %v228
  %v230 = vrot.slane %v18, %v229
  %vm231 = vcmp.ge.f32.partialorder %v230, %v17
  %vm232 = vcmp.ge.f32.partialorder %v230, %v18
  %v233 = vsel %vm231, 1, 0
  %v234 = vsel %vm232, 1, 0
  %v235 = vcvt.s32.f32 %v233
  %v236 = vcvt.s32.f32 %v234
  %v237 = vadd.f32 %v221, %v235
  %v238 = vadd.f32 %v222, %v236
  %v239 = vsel %vm231, %v230, 0.0
  %v240 = vsel %vm232, %v230, 0.0
  %v241 = vadd.f32 %v225, %v239
  %v242 = vadd.f32 %v226, %v240
  %v243 = vlaneseq
  %v244 = vshrl.u32 %v243, 7
  %v245 = vsub.s32 6, %v244
  %v246 = vrot.slane %v18, %v245
  %vm247 = vcmp.ge.f32.partialorder %v246, %v17
  %vm248 = vcmp.ge.f32.partialorder %v246, %v18
  %v249 = vsel %vm247, 1, 0
  %v250 = vsel %vm248, 1, 0
  %v251 = vcvt.s32.f32 %v249
  %v252 = vcvt.s32.f32 %v250
  %v253 = vadd.f32 %v237, %v251
  %v254 = vadd.f32 %v238, %v252
  %v255 = vsel %vm247, %v246, 0.0
  %v256 = vsel %vm248, %v246, 0.0
  %v257 = vadd.f32 %v241, %v255
  %v258 = vadd.f32 %v242, %v256
  %v259 = vlaneseq
  %v260 = vshrl.u32 %v259, 7
  %v261 = vsub.s32 7, %v260
  %v262 = vrot.slane %v18, %v261
  %vm263 = vcmp.ge.f32.partialorder %v262, %v17
  %vm264 = vcmp.ge.f32.partialorder %v262, %v18
  %v265 = vsel %vm263, 1, 0
  %v266 = vsel %vm264, 1, 0
  %v267 = vcvt.s32.f32 %v265
  %v268 = vcvt.s32.f32 %v266
  %v269 = vadd.f32 %v253, %v267
  %v270 = vadd.f32 %v254, %v268
  %v271 = vsel %vm263, %v262, 0.0
  %v272 = vsel %vm264, %v262, 0.0
  %v273 = vadd.f32 %v257, %v271
  %v274 = vadd.f32 %v258, %v272
  %v275 = vmul.f32 %v269, %v17
  %v276 = vmul.f32 %v270, %v18
  %v277 = vadd.f32 %v275, 1.0
  %v278 = vadd.f32 %v276, 1.0
  %vm279 = vcmp.gt.f32.partialorder %v277, %v273
  %vm280 = vcmp.gt.f32.partialorder %v278, %v274
  %v281 = vsel %vm279, 1, 0
  %v282 = vsel %vm280, 1, 0
  %v283 = vcvt.s32.f32 %v281
  %v284 = vcvt.s32.f32 %v282
  %v285 = vadd.f32 %v283, %v284
  %v286 = vrot.slane %v285, 4
  %v287 = vadd.f32 %v285, %v286
  %v288 = vrot.slane %v287, 2
  %v289 = vadd.f32 %v287, %v288
  %v290 = vrot.slane %v289, 1
  %v291 = vadd.f32 %v289, %v290
  %v292 = vsel %vm279, %v17, 0.0
  %v293 = vsel %vm280, %v18, 0.0
  %v294 = vadd.f32 %v292, %v293
  %v295 = vrot.slane %v294, 4
  %v296 = vadd.f32 %v294, %v295
  %v297 = vrot.slane %v296, 2
  %v298 = vadd.f32 %v296, %v297
  %v299 = vrot.slane %v298, 1
  %v300 = vadd.f32 %v298, %v299
  %v301 = vsub.f32 %v300, 1.0
  %v302 = vrcp.pop %v291
  %v303 = vmul.f32 %v301, %v302
  %v304 = vsub.f32 %v17, %v303
  %v305 = vsub.f32 %v18, %v303
  %v306 = vmax.f32 %v304, 0.0
  %v307 = vmax.f32 %v305, 0.0
  %308 = vst [vmem:[%s1] sm:$0xff] %v306
  %309 = vst [vmem:[%s1 + $0x8] sm:$0xff] %v307
  // Predicated region
  $region6: #{soft_thresholding_operation.1} parent=0 // pred_check
    _
  $region7: #{soft_thresholding_operation.1} parent=0 // pred_check_branch
    %311 = sbr.rel (0) target = $region9
  $region8: #{soft_thresholding_operation.1} parent=0 // pred_region
    _
  $region9: #{soft_thresholding_operation.1} parent=0 // pred_fallthru
    _
  // Predicated region
  $region10: #{soft_thresholding_operation.1} parent=0 // pred_check
    _
  $region11: #{soft_thresholding_operation.1} parent=0 // pred_check_branch
    %313 = sbr.rel (0) target = $region13
  $region12: #{soft_thresholding_operation.1} parent=0 // pred_region
    _
  $region13: #{soft_thresholding_operation.1} parent=0 // pred_fallthru
    _

</llo_original>
